<compile_context>
chip_gen: v7x
topology: tpu7x:2x2x1
jax: 0.10.0
libtpu: 0.0.40
codegen_flags: <defaults>
</compile_context>

<pallas_src>
import functools

import jax
import jax.numpy as jnp
from jax.experimental import pallas as pl
from jax.experimental.pallas import tpu as pltpu


_LANE = 128            # lane width (last-dim granularity)
_SUBLANE_TM = 16       # row-tile granularity (mult. of 16 keeps bf16 scratch natively tiled)
_MAX_TM = 512          # default max rows per tile (large-batch: fewer weight re-reads)
_MAX_TN_FINAL = 2048   # default final-layer output tile width (multiple of 256)
_VMEM_LIMIT = 48 * 1024 * 1024   # fits v7x's 64 MiB physical VMEM with margin


def _round_up(x, m):
    return ((x + m - 1) // m) * m


def _m_tiling(m, max_tm):
    assert max_tm % _SUBLANE_TM == 0
    tm = max_tm if m > max_tm else _round_up(m, _SUBLANE_TM)
    return tm, _round_up(m, tm)


def _n_tiling(n, max_tn):
    assert max_tn % _LANE == 0
    n128 = _round_up(n, _LANE)
    tn = min(n128, max_tn)
    return tn, _round_up(n, tn)


# ---------------------------------------------------------------------------
# Fused kernel:  hidden MLP (at j == 0, into VMEM scratch)  +  final layer tile
# ---------------------------------------------------------------------------
def _make_fused_kernel(num_hidden):
    def kernel(*refs):
        # refs = x, (w_i, b_i) * num_hidden, w_final, b_final, gb, out, h_scratch
        x_ref = refs[0]
        hidden = [(refs[1 + 2 * i], refs[2 + 2 * i]) for i in range(num_hidden)]
        wf_ref, bf_ref, gb_ref = refs[1 + 2 * num_hidden: 4 + 2 * num_hidden]
        o_ref = refs[4 + 2 * num_hidden]
        h_ref = refs[5 + 2 * num_hidden]

        # Hidden stack runs once per M tile (first N step only); result kept
        # in VMEM (bf16) and reused by every final-layer N tile.
        @pl.when(pl.program_id(1) == 0)
        def _():
            h = x_ref[...].astype(jnp.bfloat16)              # only f32->bf16 cast
            for w_ref, b_ref in hidden:
                y = jnp.dot(h, w_ref[...], preferred_element_type=jnp.float32)
                y = y + b_ref[...]                           # BN already folded
                h = jnp.maximum(y, 0.0).astype(jnp.bfloat16)
            h_ref[...] = h

        # Final layer tile + fused epilogue (f32 on the VPU/EUP).
        y = jnp.dot(h_ref[...], wf_ref[...], preferred_element_type=jnp.float32)
        y = y + bf_ref[...]
        s = jax.nn.sigmoid(y)
        o_ref[...] = jnp.log2(s * gb_ref[...] + 1.0).astype(o_ref.dtype)

    return kernel


# ---------------------------------------------------------------------------
# Forward (single pallas_call)
# ---------------------------------------------------------------------------
@functools.partial(jax.jit, static_argnames=("max_tm",))
def deeprbp_forward(params, xb, gb, max_tm=_MAX_TM):
    hidden = params["hidden"]
    fin = params["final"]
    num_hidden = len(hidden)

    m, k = xb.shape
    n = gb.shape[1]
    tm, mpad = _m_tiling(m, max_tm)

    # tn / n_blocks are read off the pre-tiled weight shape -> prep/run agree.
    n_blocks, kpad_last, tn = fin["w"].shape
    npad = n_blocks * tn
    kpad_in = hidden[0]["w"].shape[0] if num_hidden else kpad_last

    x = xb
    if (mpad, kpad_in) != (m, k):
        x = jnp.pad(xb, ((0, mpad - m), (0, kpad_in - k)))
    gbp = gb
    if (mpad, npad) != (m, n):
        # zero-padded gb keeps padded lanes finite: log2(sigmoid(.)*0 + 1) = 0
        gbp = jnp.pad(gb, ((0, mpad - m), (0, npad - n)))

    in_specs = [pl.BlockSpec((tm, kpad_in), lambda i, j: (i, 0))]     # x (full K)
    operands = [x]
    for layer in hidden:
        kp, np_ = layer["w"].shape
        # Constant index_map -> VMEM-resident across the whole grid.
        in_specs.append(pl.BlockSpec((kp, np_), lambda i, j: (0, 0)))  # W_i (bf16)
        in_specs.append(pl.BlockSpec((1, np_), lambda i, j: (0, 0)))   # folded bias_i
        operands += [layer["w"], layer["b"]]
    # Final weight: contiguous pre-tiled slabs (n_blocks, kpad_last, tn).
    in_specs.append(pl.BlockSpec((pl.Squeezed(), kpad_last, tn),
                                 lambda i, j: (j, 0, 0)))
    in_specs.append(pl.BlockSpec((1, tn), lambda i, j: (0, j)))        # final bias
    in_specs.append(pl.BlockSpec((tm, tn), lambda i, j: (i, j)))       # gene expr
    operands += [fin["w"], fin["b"], gbp]

    out = pl.pallas_call(
        _make_fused_kernel(num_hidden),
        out_shape=jax.ShapeDtypeStruct((mpad, npad), jnp.float32),
        grid_spec=pltpu.PrefetchScalarGridSpec(
            num_scalar_prefetch=0,
            grid=(mpad // tm, n_blocks),
            in_specs=in_specs,
            out_specs=pl.BlockSpec((tm, tn), lambda i, j: (i, j)),
            scratch_shapes=[pltpu.VMEM((tm, kpad_last), jnp.bfloat16)],
        ),
        compiler_params=pltpu.CompilerParams(
            # N axis is "arbitrary": the hidden-activation scratch is carried
            # across the final-layer N tiles; M tiles are independent.
            dimension_semantics=("parallel", "arbitrary"),
            vmem_limit_bytes=_VMEM_LIMIT,
        ),
    )(*operands)
    return out[:m, :n]


# ---------------------------------------------------------------------------
# Parameter construction (synthetic): BN folding, padding, bf16 + pre-tiling
# ---------------------------------------------------------------------------
def init_deeprbp_params(key, n_inputs, n_outputs, num_hidden_layers,
                        max_node, node_division_factor, same_num_nodes=False,
                        max_tn=_MAX_TN_FINAL):
    """Synthetic DeepRBP parameters.

    Returns (kernel_params, ref_params):
      kernel_params: eval-mode BN folded into each Linear (W' = W*scale,
        b' = b*scale + shift), padded to tile multiples, weights bf16; the
        final-layer weight is pre-tiled into contiguous (n_blocks, kpad, tn)
        slabs.
      ref_params: the raw f32 parameters (for an exact f32 reference).
    """
    eps = 1e-5
    params = {"hidden": [], "final": None}
    ref = {"hidden": [], "final": None, "eps": eps}
    in_f = n_inputs
    kpad = _round_up(n_inputs, _LANE)
    for i in range(num_hidden_layers):
        if i == 0:
            out_f = max_node
        elif same_num_nodes and i + 1 < num_hidden_layers:
            out_f = max_node
        else:
            out_f = round(in_f / node_division_factor)
        key, kw, kb, kg, kbt, km, kv = jax.random.split(key, 7)
        w = jax.random.normal(kw, (in_f, out_f), jnp.float32) * 0.05
        b = jax.random.normal(kb, (out_f,), jnp.float32) * 0.05
        gamma = 1.0 + 0.1 * jax.random.normal(kg, (out_f,), jnp.float32)
        beta = 0.1 * jax.random.normal(kbt, (out_f,), jnp.float32)
        run_mean = 0.1 * jax.random.normal(km, (out_f,), jnp.float32)
        run_var = 1.0 + 0.1 * jax.random.uniform(kv, (out_f,), jnp.float32)
        ref["hidden"].append(dict(w=w, b=b, gamma=gamma, beta=beta,
                                  mean=run_mean, var=run_var))
        # Fold eval-mode BN: (xW + b)*scale + shift == x(W*scale) + (b*scale + shift)
        scale = gamma / jnp.sqrt(run_var + eps)
        shift = beta - run_mean * scale
        w_f = w * scale[None, :]
        b_f = b * scale + shift
        npad_h = _round_up(out_f, _LANE)
        wp = jnp.zeros((kpad, npad_h), jnp.float32).at[:in_f, :out_f].set(w_f)
        bp = jnp.zeros((1, npad_h), jnp.float32).at[0, :out_f].set(b_f)
        params["hidden"].append({"w": wp.astype(jnp.bfloat16), "b": bp})
        in_f, kpad = out_f, npad_h

    key, kw, kb = jax.random.split(key, 3)
    wf = jax.random.normal(kw, (in_f, n_outputs), jnp.float32) * 0.05
    bf = jax.random.normal(kb, (n_outputs,), jnp.float32) * 0.05
    ref["final"] = dict(w=wf, b=bf)
    tn, npad = _n_tiling(n_outputs, max_tn)
    n_blocks = npad // tn
    wfp = jnp.zeros((kpad, npad), jnp.float32).at[:in_f, :n_outputs].set(wf)
    # Pre-tile the final weight into contiguous (n_blocks, kpad, tn) HBM slabs.
    wft = wfp.reshape(kpad, n_blocks, tn).transpose(1, 0, 2)
    bfp = jnp.zeros((1, npad), jnp.float32).at[0, :n_outputs].set(bf)
    params["final"] = {"w": wft.astype(jnp.bfloat16), "b": bfp}
    return params, ref


# ---------------------------------------------------------------------------
# References
# ---------------------------------------------------------------------------
def deeprbp_ref_f32(ref, xb, gb):
    """True f32 DeepRBP forward (eval-mode BN), no bf16 anywhere."""
    x = xb
    for l in ref["hidden"]:
        y = x @ l["w"] + l["b"]
        y = (y - l["mean"]) * (l["gamma"] / jnp.sqrt(l["var"] + ref["eps"])) + l["beta"]
        x = jnp.maximum(y, 0.0)
    y = x @ ref["final"]["w"] + ref["final"]["b"]
    return jnp.log2(jax.nn.sigmoid(y) * gb + 1.0)


def deeprbp_ref_kernel_numerics(params, xb, gb):
    """Pure-JAX reference mirroring the kernel's numerics (bf16 weights/acts)."""
    hidden = params["hidden"]
    fin = params["final"]
    m, k = xb.shape
    n = gb.shape[1]
    n_blocks, kpad_last, tn = fin["w"].shape
    kpad_in = hidden[0]["w"].shape[0] if hidden else kpad_last
    x = jnp.pad(xb, ((0, 0), (0, kpad_in - k)))
    h = x.astype(jnp.bfloat16)
    for l in hidden:
        y = jnp.dot(h, l["w"], preferred_element_type=jnp.float32) + l["b"]
        h = jnp.maximum(y, 0.0).astype(jnp.bfloat16)
    wf2d = fin["w"].transpose(1, 0, 2).reshape(kpad_last, n_blocks * tn)
    y = jnp.dot(h, wf2d, preferred_element_type=jnp.float32) + fin["b"]
    gbp = jnp.pad(gb, ((0, 0), (0, n_blocks * tn - n)))
    return jnp.log2(jax.nn.sigmoid(y) * gbp + 1.0)[:, :n]


if __name__ == "__main__":
    # Small synthetic config (real model: n_inputs=1282, n_outputs=11459).
    # Shapes deliberately non-multiples of 128, batch non-multiple of the row
    # tile, and small max_tm / max_tn so the (3 x 3) grid exercises the
    # pl.when(j==0) hidden-stack caching and the pipelined final-layer tiles.
    batch = 40
    n_inputs = 200
    n_outputs = 700
    num_hidden_layers = 2
    max_node = 128
    node_division_factor = 2   # hidden sizes: 128 -> 64

    key = jax.random.PRNGKey(0)
    kp, kx, kg = jax.random.split(key, 3)
    params, ref_params = init_deeprbp_params(
        kp, n_inputs, n_outputs, num_hidden_layers, max_node,
        node_division_factor, max_tn=256)

    xb = jax.random.normal(kx, (batch, n_inputs), jnp.float32)           # RBP input
    gb = jax.random.uniform(kg, (batch, n_outputs), jnp.float32) * 10.0  # gene expr

    out = deeprbp_forward(params, xb, gb, max_tm=16)
    out = jax.block_until_ready(out)

    assert out.shape == (batch, n_outputs)
    assert bool(jnp.all(jnp.isfinite(out))), "non-finite values in output"

    # Tight check vs a reference with identical (bf16) numerics.
    ref_bf16 = deeprbp_ref_kernel_numerics(params, xb, gb)
    assert jnp.allclose(out, ref_bf16, atol=2e-4, rtol=2e-4), \
        "mismatch vs bf16-mirroring reference"

    # Looser check vs the true f32 model: bf16 weight/activation rounding over
    # K<=256 chained through 3 layers gives |dy| ~ 1e-2, and d(out)/dy <= ~3.6
    # for gb <= 10, so 0.1 abs/rel is a safe but still meaningful bound.
    ref_f32 = deeprbp_ref_f32(ref_params, xb, gb)
    assert jnp.allclose(out, ref_f32, atol=1e-1, rtol=1e-1), \
        "mismatch vs f32 DeepRBP reference"

    print("KERNEL_OK")
</pallas_src>

<mosaic_0001>
module attributes {stable_mosaic.version = 11 : i64} {
  func.func @kernel(%arg0: i32, %arg1: i32, %arg2: memref<16x256xf32, #tpu.memory_space<vmem>>, %arg3: memref<256x128xbf16, #tpu.memory_space<vmem>>, %arg4: memref<1x128xf32, #tpu.memory_space<vmem>>, %arg5: memref<128x128xbf16, #tpu.memory_space<vmem>>, %arg6: memref<1x128xf32, #tpu.memory_space<vmem>>, %arg7: memref<1x128x256xbf16, #tpu.memory_space<vmem>>, %arg8: memref<1x256xf32, #tpu.memory_space<vmem>>, %arg9: memref<16x256xf32, #tpu.memory_space<vmem>>, %arg10: memref<16x256xf32, #tpu.memory_space<vmem>>, %arg11: memref<16x128xbf16, #tpu.memory_space<vmem>>) attributes {dimension_semantics = [#tpu.dimension_semantics<parallel>, #tpu.dimension_semantics<arbitrary>], iteration_bounds = array<i64: 3, 3>, scalar_prefetch = 0 : i64, scratch_operands = 1 : i64, tpu.core_type = #tpu.core_type<tc>, window_params = [{transform_indices = @transform_0, window_bounds = array<i64: 16, 256>}, {pipeline_mode = #tpu.pipeline_mode<synchronous>, transform_indices = @transform_1, window_bounds = array<i64: 256, 128>}, {pipeline_mode = #tpu.pipeline_mode<synchronous>, transform_indices = @transform_2, window_bounds = array<i64: 1, 128>}, {pipeline_mode = #tpu.pipeline_mode<synchronous>, transform_indices = @transform_3, window_bounds = array<i64: 128, 128>}, {pipeline_mode = #tpu.pipeline_mode<synchronous>, transform_indices = @transform_4, window_bounds = array<i64: 1, 128>}, {transform_indices = @transform_5, window_bounds = array<i64: 1, 128, 256>}, {transform_indices = @transform_6, window_bounds = array<i64: 1, 256>}, {transform_indices = @transform_7, window_bounds = array<i64: 16, 256>}, {transform_indices = @transform_8, window_bounds = array<i64: 16, 256>}]} {
    %c0_i32 = arith.constant 0 : i32
    %0 = arith.cmpi eq, %arg1, %c0_i32 : i32
    %1 = arith.extui %0 : i1 to i32
    %c0_i32_0 = arith.constant 0 : i32
    %2 = arith.cmpi ne, %1, %c0_i32_0 : i32
    scf.if %2 {
      %c0_14 = arith.constant 0 : index
      %c0_15 = arith.constant 0 : index
      %24 = vector.load %arg2[%c0_14, %c0_15] : memref<16x256xf32, #tpu.memory_space<vmem>>, vector<16x256xf32>
      %25 = arith.truncf %24 : vector<16x256xf32> to vector<16x256xbf16>
      %c0_16 = arith.constant 0 : index
      %c0_17 = arith.constant 0 : index
      %26 = vector.load %arg3[%c0_16, %c0_17] : memref<256x128xbf16, #tpu.memory_space<vmem>>, vector<256x128xbf16>
      %cst_18 = arith.constant dense<0.000000e+00> : vector<16x128xf32>
      %27 = tpu.matmul %25, %26, %cst_18 {dimension_numbers = #tpu.dot_dimension_numbers<[1], [0], [0], [1], [0, 0, 1, 1], [], []>} : vector<16x256xbf16>, vector<256x128xbf16>, vector<16x128xf32> -> vector<16x128xf32>
      %c0_19 = arith.constant 0 : index
      %c0_20 = arith.constant 0 : index
      %28 = vector.load %arg4[%c0_19, %c0_20] : memref<1x128xf32, #tpu.memory_space<vmem>>, vector<1x128xf32>
      %29 = vector.broadcast %28 : vector<1x128xf32> to vector<16x128xf32>
      %30 = arith.addf %27, %29 : vector<16x128xf32>
      %cst_21 = arith.constant 0.000000e+00 : f32
      %31 = vector.broadcast %cst_21 : f32 to vector<16x128xf32>
      %32 = arith.maximumf %30, %31 : vector<16x128xf32>
      %33 = arith.truncf %32 : vector<16x128xf32> to vector<16x128xbf16>
      %c0_22 = arith.constant 0 : index
      %c0_23 = arith.constant 0 : index
      %34 = vector.load %arg5[%c0_22, %c0_23] : memref<128x128xbf16, #tpu.memory_space<vmem>>, vector<128x128xbf16>
      %cst_24 = arith.constant dense<0.000000e+00> : vector<16x128xf32>
      %35 = tpu.matmul %33, %34, %cst_24 {dimension_numbers = #tpu.dot_dimension_numbers<[1], [0], [0], [1], [0, 0, 1, 1], [], []>} : vector<16x128xbf16>, vector<128x128xbf16>, vector<16x128xf32> -> vector<16x128xf32>
      %c0_25 = arith.constant 0 : index
      %c0_26 = arith.constant 0 : index
      %36 = vector.load %arg6[%c0_25, %c0_26] : memref<1x128xf32, #tpu.memory_space<vmem>>, vector<1x128xf32>
      %37 = vector.broadcast %36 : vector<1x128xf32> to vector<16x128xf32>
      %38 = arith.addf %35, %37 : vector<16x128xf32>
      %cst_27 = arith.constant 0.000000e+00 : f32
      %39 = vector.broadcast %cst_27 : f32 to vector<16x128xf32>
      %40 = arith.maximumf %38, %39 : vector<16x128xf32>
      %41 = arith.truncf %40 : vector<16x128xf32> to vector<16x128xbf16>
      %c0_28 = arith.constant 0 : index
      %c0_29 = arith.constant 0 : index
      %42 = vector.load %arg11[%c0_28, %c0_29] : memref<16x128xbf16, #tpu.memory_space<vmem>>, vector<16x128xbf16>
      tpu.vector_store %arg11[%c0_28, %c0_29], %41 {strides = array<i32>} : memref<16x128xbf16, #tpu.memory_space<vmem>>, vector<16x128xbf16>,
    } else {
    }
    %c0 = arith.constant 0 : index
    %c0_1 = arith.constant 0 : index
    %3 = vector.load %arg11[%c0, %c0_1] : memref<16x128xbf16, #tpu.memory_space<vmem>>, vector<16x128xbf16>
    %c0_2 = arith.constant 0 : index
    %c0_3 = arith.constant 0 : index
    %c0_4 = arith.constant 0 : index
    %4 = vector.load %arg7[%c0_2, %c0_3, %c0_4] : memref<1x128x256xbf16, #tpu.memory_space<vmem>>, vector<1x128x256xbf16>
    %5 = vector.shape_cast %4 : vector<1x128x256xbf16> to vector<128x256xbf16>
    %cst = arith.constant dense<0.000000e+00> : vector<16x256xf32>
    %6 = tpu.matmul %3, %5, %cst {dimension_numbers = #tpu.dot_dimension_numbers<[1], [0], [0], [1], [0, 0, 1, 1], [], []>} : vector<16x128xbf16>, vector<128x256xbf16>, vector<16x256xf32> -> vector<16x256xf32>
    %c0_5 = arith.constant 0 : index
    %c0_6 = arith.constant 0 : index
    %7 = vector.load %arg8[%c0_5, %c0_6] : memref<1x256xf32, #tpu.memory_space<vmem>>, vector<1x256xf32>
    %8 = vector.broadcast %7 : vector<1x256xf32> to vector<16x256xf32>
    %9 = arith.addf %6, %8 : vector<16x256xf32>
    %10 = arith.negf %9 : vector<16x256xf32>
    %11 = math.exp %10 : vector<16x256xf32>
    %cst_7 = arith.constant 1.000000e+00 : f32
    %12 = vector.broadcast %cst_7 : f32 to vector<16x256xf32>
    %13 = arith.addf %12, %11 : vector<16x256xf32>
    %14 = arith.divf %12, %13 : vector<16x256xf32>
    %c0_8 = arith.constant 0 : index
    %c0_9 = arith.constant 0 : index
    %15 = vector.load %arg9[%c0_8, %c0_9] : memref<16x256xf32, #tpu.memory_space<vmem>>, vector<16x256xf32>
    %16 = arith.mulf %14, %15 : vector<16x256xf32>
    %cst_10 = arith.constant 1.000000e+00 : f32
    %17 = vector.broadcast %cst_10 : f32 to vector<16x256xf32>
    %18 = arith.addf %16, %17 : vector<16x256xf32>
    %19 = math.log %18 : vector<16x256xf32>
    %cst_11 = arith.constant 2.000000e+00 : f32
    %20 = math.log %cst_11 : f32
    %21 = vector.broadcast %20 : f32 to vector<16x256xf32>
    %22 = arith.divf %19, %21 : vector<16x256xf32>
    %c0_12 = arith.constant 0 : index
    %c0_13 = arith.constant 0 : index
    %23 = vector.load %arg10[%c0_12, %c0_13] : memref<16x256xf32, #tpu.memory_space<vmem>>, vector<16x256xf32>
    tpu.vector_store %arg10[%c0_12, %c0_13], %22 {strides = array<i32>} : memref<16x256xf32, #tpu.memory_space<vmem>>, vector<16x256xf32>,
    return
  }
  func.func @transform_0(%arg0: i32, %arg1: i32) -> (i32, i32) {
    %c0_i32 = arith.constant 0 : i32
    %c0_i32_0 = arith.constant 0 : i32
    return %arg0, %c0_i32 : i32, i32
  }
  func.func @transform_1(%arg0: i32, %arg1: i32) -> (i32, i32) {
    %c0_i32 = arith.constant 0 : i32
    %c0_i32_0 = arith.constant 0 : i32
    %c0_i32_1 = arith.constant 0 : i32
    return %c0_i32, %c0_i32_0 : i32, i32
  }
  func.func @transform_2(%arg0: i32, %arg1: i32) -> (i32, i32) {
    %c0_i32 = arith.constant 0 : i32
    %c0_i32_0 = arith.constant 0 : i32
    %c0_i32_1 = arith.constant 0 : i32
    return %c0_i32, %c0_i32_0 : i32, i32
  }
  func.func @transform_3(%arg0: i32, %arg1: i32) -> (i32, i32) {
    %c0_i32 = arith.constant 0 : i32
    %c0_i32_0 = arith.constant 0 : i32
    %c0_i32_1 = arith.constant 0 : i32
    return %c0_i32, %c0_i32_0 : i32, i32
  }
  func.func @transform_4(%arg0: i32, %arg1: i32) -> (i32, i32) {
    %c0_i32 = arith.constant 0 : i32
    %c0_i32_0 = arith.constant 0 : i32
    %c0_i32_1 = arith.constant 0 : i32
    return %c0_i32, %c0_i32_0 : i32, i32
  }
  func.func @transform_5(%arg0: i32, %arg1: i32) -> (i32, i32, i32) {
    %c0_i32 = arith.constant 0 : i32
    %c0_i32_0 = arith.constant 0 : i32
    %c0_i32_1 = arith.constant 0 : i32
    return %arg1, %c0_i32, %c0_i32_0 : i32, i32, i32
  }
  func.func @transform_6(%arg0: i32, %arg1: i32) -> (i32, i32) {
    %c0_i32 = arith.constant 0 : i32
    %c0_i32_0 = arith.constant 0 : i32
    return %c0_i32, %arg1 : i32, i32
  }
  func.func @transform_7(%arg0: i32, %arg1: i32) -> (i32, i32) {
    %c0_i32 = arith.constant 0 : i32
    return %arg0, %arg1 : i32, i32
  }
  func.func @transform_8(%arg0: i32, %arg1: i32) -> (i32, i32) {
    %c0_i32 = arith.constant 0 : i32
    return %arg0, %arg1 : i32, i32
  }
}

</mosaic_0001>

<llo_original>
// kernel: deeprbp_forward.1
$region0: #{deeprbp_forward.1}
  #allocation0 [shape = 'u32[]', space=smem, size = 0x4, offset = 0x4, fixed_abs, tag = 'smem constant byte address 0x4 - core index']
  #allocation1 [shape = 'u32[144,128]{1,0:T(1,128)}', space=vmem, size = 0x12000, scoped, tag = 'internal scratch']
  #allocation2 [shape = 'bf16[16,128]{1,0:T(16,128)(2,1)}', space=vmem, size = 0x1000, scoped, tag = 'scratch operand']
  %s0 = inlined_call_operand.vmem [shape: f32[48,256], index: 0, kind: input, shape index: {}]
  %s1 = inlined_call_operand.vmem [shape: bf16[256,128], index: 1, kind: input, shape index: {}]
  %s2 = inlined_call_operand.vmem [shape: f32[1,128], index: 2, kind: input, shape index: {}]
  %s3 = inlined_call_operand.vmem [shape: bf16[128,128], index: 3, kind: input, shape index: {}]
  %s4 = inlined_call_operand.vmem [shape: f32[1,128], index: 4, kind: input, shape index: {}]
  %s5 = inlined_call_operand.vmem [shape: bf16[3,128,256], index: 5, kind: input, shape index: {}]
  %s6 = inlined_call_operand.vmem [shape: f32[1,768], index: 6, kind: input, shape index: {}]
  %s7 = inlined_call_operand.vmem [shape: f32[48,768], index: 7, kind: input, shape index: {}]
  %s8 = inlined_call_operand.vmem [shape: f32[48,768], index: 8, kind: output, shape index: {}]
  %s9 = sld [smem:[#allocation0]]
  $region111: #{deeprbp_forward.1} parent=0
    _
  %s11 = ssub.s32 1, %s9
  %s12 = scalar_select 0, %s11, %s9
  $region1: #{deeprbp_forward.1} parent=0
    #allocation3 [shape = 'u8[32768]{0}', space=vmem, size = 0x8000, scoped, tag = 'input window, operand 7']
    #allocation4 [shape = 'u8[32768]{0}', space=vmem, size = 0x8000, scoped, tag = 'output window, operand 0']
    loop: start=0, step=1, limit=11
    $region2: #{deeprbp_forward.1} parent=1 // loop_pre_header
      _
    $region3: #{deeprbp_forward.1} parent=1 // loop_header
      %s14 = sphi 0, %s18
      %p15 = scmp.ge.s32.totalorder %s14, 11
      %s21 = sphi 0, %s33
      %s22 = sphi 0, %s29
      %s23 = sphi 0, %s21
      %s24 = sphi 0, %s22
      %s25 = sphi 0, %s23
      %s26 = sphi 0, %s24
      %s36 = sphi 0, %s38
      %s39 = sphi 0, %s36
      %s40 = sphi 0, %s39
      %s56 = sphi 0, %s40
      %s60 = sphi 0, %s60
      %s62 = sphi 0, %s60
      %s63 = sphi 0, %s62
      %s77 = sphi 0, %s63
      %s81 = sphi 0, %s81
      %s83 = sphi 0, %s81
      %s84 = sphi 0, %s83
      %s98 = sphi 0, %s84
      %s102 = sphi 0, %s102
      %s104 = sphi 0, %s102
      %s105 = sphi 0, %s104
      %s119 = sphi 0, %s105
      %s123 = sphi 0, %s123
      %s125 = sphi 0, %s123
      %s126 = sphi 0, %s125
      %s140 = sphi 0, %s126
      %s146 = sphi 0, %s148
      %s149 = sphi 0, %s146
      %s150 = sphi 0, %s149
      %s166 = sphi 0, %s150
      %s172 = sphi 0, %s174
      %s175 = sphi 0, %s172
      %s176 = sphi 0, %s175
      %s192 = sphi 0, %s176
      %s200 = sphi 0, %s202
      %s203 = sphi 0, %s200
      %s204 = sphi 0, %s203
      %s220 = sphi 0, %s204
      %s228 = sphi 0, %s230
      %s231 = sphi 0, %s228
      %s232 = sphi 0, %s231
      %s248 = sphi 0, %s232
    $region4: #{deeprbp_forward.1} parent=1 // loop_header_branch
      %17 = sbr.rel (%p15) target = $region8
    $region5: #{deeprbp_forward.1} parent=1 // loop_body
      %s19 = ssub.s32 %s14, 1
      %s20 = ssub.s32 %s14, 2
      %s27 = sadd.s32 1, %s22
      %p28 = scmp.ge.s32.totalorder %s27, 3
      %s29 = scalar_select %p28, 0, %s27
      %s30 = sadd.s32 1, %s21
      %s31 = scalar_select %p28, %s30, %s21
      %p32 = scmp.ge.s32.totalorder %s31, 3
      %s33 = scalar_select %p32, 0, %s31
      %s34 = ssub.s32 %s21, %s33
      %p35 = scmp.eq.s32.totalorder %s34, 0
      %s37 = sadd.s32 %s36, 1
      %s38 = scalar_select %p35, %s36, %s37
      %p41 = pneg %p35
      %p42 = scmp.eq.s32.totalorder %s14, 8
      %p43 = por %p41, %p42
      %p44 = scmp.ne.s32.totalorder %s36, %s39
      %p45 = scmp.eq.s32.totalorder %s14, 0
      %p46 = por %p44, %p45
      %p47 = scmp.ne.s32.totalorder %s36, %s39
      %p48 = scmp.eq.s32.totalorder %s19, 8
      %p49 = por %p47, %p48
      %p50 = scmp.ne.s32.totalorder %s39, %s40
      %p51 = scmp.eq.s32.totalorder %s19, 0
      %p52 = por %p50, %p51
      %p53 = scmp.ne.s32.totalorder %s39, %s40
      %p54 = scmp.eq.s32.totalorder %s20, 8
      %p55 = por %p53, %p54
      %p57 = scmp.ne.s32.totalorder %s40, %s56
      %p58 = scmp.eq.s32.totalorder %s20, 0
      %p59 = por %p57, %p58
      %s61 = sadd.s32 %s60, 1
      %p64 = scmp.eq.s32.totalorder %s14, 8
      %p65 = scmp.ne.s32.totalorder %s60, %s62
      %p66 = scmp.eq.s32.totalorder %s14, 0
      %p67 = por %p65, %p66
      %p68 = scmp.ne.s32.totalorder %s60, %s62
      %p69 = scmp.eq.s32.totalorder %s19, 8
      %p70 = por %p68, %p69
      %p71 = scmp.ne.s32.totalorder %s62, %s63
      %p72 = scmp.eq.s32.totalorder %s19, 0
      %p73 = por %p71, %p72
      %p74 = scmp.ne.s32.totalorder %s62, %s63
      %p75 = scmp.eq.s32.totalorder %s20, 8
      %p76 = por %p74, %p75
      %p78 = scmp.ne.s32.totalorder %s63, %s77
      %p79 = scmp.eq.s32.totalorder %s20, 0
      %p80 = por %p78, %p79
      %s82 = sadd.s32 %s81, 1
      %p85 = scmp.eq.s32.totalorder %s14, 8
      %p86 = scmp.ne.s32.totalorder %s81, %s83
      %p87 = scmp.eq.s32.totalorder %s14, 0
      %p88 = por %p86, %p87
      %p89 = scmp.ne.s32.totalorder %s81, %s83
      %p90 = scmp.eq.s32.totalorder %s19, 8
      %p91 = por %p89, %p90
      %p92 = scmp.ne.s32.totalorder %s83, %s84
      %p93 = scmp.eq.s32.totalorder %s19, 0
      %p94 = por %p92, %p93
      %p95 = scmp.ne.s32.totalorder %s83, %s84
      %p96 = scmp.eq.s32.totalorder %s20, 8
      %p97 = por %p95, %p96
      %p99 = scmp.ne.s32.totalorder %s84, %s98
      %p100 = scmp.eq.s32.totalorder %s20, 0
      %p101 = por %p99, %p100
      %s103 = sadd.s32 %s102, 1
      %p106 = scmp.eq.s32.totalorder %s14, 8
      %p107 = scmp.ne.s32.totalorder %s102, %s104
      %p108 = scmp.eq.s32.totalorder %s14, 0
      %p109 = por %p107, %p108
      %p110 = scmp.ne.s32.totalorder %s102, %s104
      %p111 = scmp.eq.s32.totalorder %s19, 8
      %p112 = por %p110, %p111
      %p113 = scmp.ne.s32.totalorder %s104, %s105
      %p114 = scmp.eq.s32.totalorder %s19, 0
      %p115 = por %p113, %p114
      %p116 = scmp.ne.s32.totalorder %s104, %s105
      %p117 = scmp.eq.s32.totalorder %s20, 8
      %p118 = por %p116, %p117
      %p120 = scmp.ne.s32.totalorder %s105, %s119
      %p121 = scmp.eq.s32.totalorder %s20, 0
      %p122 = por %p120, %p121
      %s124 = sadd.s32 %s123, 1
      %p127 = scmp.eq.s32.totalorder %s14, 8
      %p128 = scmp.ne.s32.totalorder %s123, %s125
      %p129 = scmp.eq.s32.totalorder %s14, 0
      %p130 = por %p128, %p129
      %p131 = scmp.ne.s32.totalorder %s123, %s125
      %p132 = scmp.eq.s32.totalorder %s19, 8
      %p133 = por %p131, %p132
      %p134 = scmp.ne.s32.totalorder %s125, %s126
      %p135 = scmp.eq.s32.totalorder %s19, 0
      %p136 = por %p134, %p135
      %p137 = scmp.ne.s32.totalorder %s125, %s126
      %p138 = scmp.eq.s32.totalorder %s20, 8
      %p139 = por %p137, %p138
      %p141 = scmp.ne.s32.totalorder %s126, %s140
      %p142 = scmp.eq.s32.totalorder %s20, 0
      %p143 = por %p141, %p142
      %s144 = ssub.s32 %s22, %s29
      %p145 = scmp.eq.s32.totalorder %s144, 0
      %s147 = sadd.s32 %s146, 1
      %s148 = scalar_select %p145, %s146, %s147
      %p151 = pneg %p145
      %p152 = scmp.eq.s32.totalorder %s14, 8
      %p153 = por %p151, %p152
      %p154 = scmp.ne.s32.totalorder %s146, %s149
      %p155 = scmp.eq.s32.totalorder %s14, 0
      %p156 = por %p154, %p155
      %p157 = scmp.ne.s32.totalorder %s146, %s149
      %p158 = scmp.eq.s32.totalorder %s19, 8
      %p159 = por %p157, %p158
      %p160 = scmp.ne.s32.totalorder %s149, %s150
      %p161 = scmp.eq.s32.totalorder %s19, 0
      %p162 = por %p160, %p161
      %p163 = scmp.ne.s32.totalorder %s149, %s150
      %p164 = scmp.eq.s32.totalorder %s20, 8
      %p165 = por %p163, %p164
      %p167 = scmp.ne.s32.totalorder %s150, %s166
      %p168 = scmp.eq.s32.totalorder %s20, 0
      %p169 = por %p167, %p168
      %s170 = ssub.s32 %s22, %s29
      %p171 = scmp.eq.s32.totalorder %s170, 0
      %s173 = sadd.s32 %s172, 1
      %s174 = scalar_select %p171, %s172, %s173
      %p177 = pneg %p171
      %p178 = scmp.eq.s32.totalorder %s14, 8
      %p179 = por %p177, %p178
      %p180 = scmp.ne.s32.totalorder %s172, %s175
      %p181 = scmp.eq.s32.totalorder %s14, 0
      %p182 = por %p180, %p181
      %p183 = scmp.ne.s32.totalorder %s172, %s175
      %p184 = scmp.eq.s32.totalorder %s19, 8
      %p185 = por %p183, %p184
      %p186 = scmp.ne.s32.totalorder %s175, %s176
      %p187 = scmp.eq.s32.totalorder %s19, 0
      %p188 = por %p186, %p187
      %p189 = scmp.ne.s32.totalorder %s175, %s176
      %p190 = scmp.eq.s32.totalorder %s20, 8
      %p191 = por %p189, %p190
      %p193 = scmp.ne.s32.totalorder %s176, %s192
      %p194 = scmp.eq.s32.totalorder %s20, 0
      %p195 = por %p193, %p194
      %s196 = ssub.s32 %s21, %s33
      %s197 = ssub.s32 %s22, %s29
      %s198 = sor.u32 %s196, %s197
      %p199 = scmp.eq.s32.totalorder %s198, 0
      %s201 = sadd.s32 %s200, 1
      %s202 = scalar_select %p199, %s200, %s201
      %p205 = pneg %p199
      %p206 = scmp.eq.s32.totalorder %s14, 8
      %p207 = por %p205, %p206
      %p208 = scmp.ne.s32.totalorder %s200, %s203
      %p209 = scmp.eq.s32.totalorder %s14, 0
      %p210 = por %p208, %p209
      %p211 = scmp.ne.s32.totalorder %s200, %s203
      %p212 = scmp.eq.s32.totalorder %s19, 8
      %p213 = por %p211, %p212
      %p214 = scmp.ne.s32.totalorder %s203, %s204
      %p215 = scmp.eq.s32.totalorder %s19, 0
      %p216 = por %p214, %p215
      %p217 = scmp.ne.s32.totalorder %s203, %s204
      %p218 = scmp.eq.s32.totalorder %s20, 8
      %p219 = por %p217, %p218
      %p221 = scmp.ne.s32.totalorder %s204, %s220
      %p222 = scmp.eq.s32.totalorder %s20, 0
      %p223 = por %p221, %p222
      %s224 = ssub.s32 %s21, %s33
      %s225 = ssub.s32 %s22, %s29
      %s226 = sor.u32 %s224, %s225
      %p227 = scmp.eq.s32.totalorder %s226, 0
      %s229 = sadd.s32 %s228, 1
      %s230 = scalar_select %p227, %s228, %s229
      %p233 = pneg %p227
      %p234 = scmp.eq.s32.totalorder %s14, 8
      %p235 = por %p233, %p234
      %p236 = scmp.ne.s32.totalorder %s228, %s231
      %p237 = scmp.eq.s32.totalorder %s14, 0
      %p238 = por %p236, %p237
      %p239 = scmp.ne.s32.totalorder %s228, %s231
      %p240 = scmp.eq.s32.totalorder %s19, 8
      %p241 = por %p239, %p240
      %p242 = scmp.ne.s32.totalorder %s231, %s232
      %p243 = scmp.eq.s32.totalorder %s19, 0
      %p244 = por %p242, %p243
      %p245 = scmp.ne.s32.totalorder %s231, %s232
      %p246 = scmp.eq.s32.totalorder %s20, 8
      %p247 = por %p245, %p246
      %p249 = scmp.ne.s32.totalorder %s232, %s248
      %p250 = scmp.eq.s32.totalorder %s20, 0
      %p251 = por %p249, %p250
      %p252 = scmp.le.s32.totalorder 1, %s14
      %p253 = scmp.lt.s32.totalorder %s14, 10
      %p254 = pnand %p252, %p253
      %p255 = pneg %p254
      // Predicated region
      $region9: #{deeprbp_forward.1} parent=5 // pred_check
        _
      $region10: #{deeprbp_forward.1} parent=5 // pred_check_branch
        %257 = sbr.rel (%p254) target = $region12
      $region11: #{deeprbp_forward.1} parent=5 // pred_region
        %s258 = ssub.s32 %s14, 1
        // Predicated region
        $region13: #{deeprbp_forward.1} parent=11 // pred_check
          %p259 = pneg %p73
        $region14: #{deeprbp_forward.1} parent=11 // pred_check_branch
          %261 = sbr.rel (%p259) target = $region16
        $region15: #{deeprbp_forward.1} parent=11 // pred_region
          _
        $region16: #{deeprbp_forward.1} parent=11 // pred_fallthru
          _
        // Predicated region
        $region17: #{deeprbp_forward.1} parent=11 // pred_check
          %p262 = pneg %p94
        $region18: #{deeprbp_forward.1} parent=11 // pred_check_branch
          %264 = sbr.rel (%p262) target = $region20
        $region19: #{deeprbp_forward.1} parent=11 // pred_region
          _
        $region20: #{deeprbp_forward.1} parent=11 // pred_fallthru
          _
        // Predicated region
        $region21: #{deeprbp_forward.1} parent=11 // pred_check
          %p265 = pneg %p115
        $region22: #{deeprbp_forward.1} parent=11 // pred_check_branch
          %267 = sbr.rel (%p265) target = $region24
        $region23: #{deeprbp_forward.1} parent=11 // pred_region
          _
        $region24: #{deeprbp_forward.1} parent=11 // pred_fallthru
          _
        // Predicated region
        $region25: #{deeprbp_forward.1} parent=11 // pred_check
          %p268 = pneg %p136
        $region26: #{deeprbp_forward.1} parent=11 // pred_check_branch
          %270 = sbr.rel (%p268) target = $region28
        $region27: #{deeprbp_forward.1} parent=11 // pred_region
          _
        $region28: #{deeprbp_forward.1} parent=11 // pred_fallthru
          _
      $region12: #{deeprbp_forward.1} parent=5 // pred_fallthru
        _
      %p271 = scmp.lt.s32.totalorder %s14, 9
      // Predicated region
      $region29: #{deeprbp_forward.1} parent=5 // pred_check
        %p272 = pneg %p271
      $region30: #{deeprbp_forward.1} parent=5 // pred_check_branch
        %274 = sbr.rel (%p272) target = $region32
      $region31: #{deeprbp_forward.1} parent=5 // pred_region
        // Predicated region
        $region33: #{deeprbp_forward.1} parent=31 // pred_check
          %p275 = pneg %p46
        $region34: #{deeprbp_forward.1} parent=31 // pred_check_branch
          %277 = sbr.rel (%p275) target = $region36
        $region35: #{deeprbp_forward.1} parent=31 // pred_region
          %s278 = smul.u32 2, %s21
          %p279 = scmp.lt.s32.totalorder %s278, 5
          %s280 = scalar_select %p279, %s278, 5
          %s281 = smul.addr %s280, 2
          %s282 = smul.addr %s281, 8
          %s283 = scalar_lea.vmem %s0, %s282
          %s284 = smul.u32 2, %s21
        $region36: #{deeprbp_forward.1} parent=31 // pred_fallthru
          _
        // Predicated region
        $region37: #{deeprbp_forward.1} parent=31 // pred_check
          %p285 = pneg %p156
        $region38: #{deeprbp_forward.1} parent=31 // pred_check_branch
          %287 = sbr.rel (%p285) target = $region40
        $region39: #{deeprbp_forward.1} parent=31 // pred_region
          %p288 = scmp.lt.s32.totalorder %s22, 2
          %s289 = scalar_select %p288, %s22, 2
          %s290 = smul.addr %s289, 32
          %s291 = smul.addr %s290, 4
          %s292 = scalar_lea.vmem %s5, %s291
        $region40: #{deeprbp_forward.1} parent=31 // pred_fallthru
          _
        // Predicated region
        $region41: #{deeprbp_forward.1} parent=31 // pred_check
          %p293 = pneg %p182
        $region42: #{deeprbp_forward.1} parent=31 // pred_check_branch
          %295 = sbr.rel (%p293) target = $region44
        $region43: #{deeprbp_forward.1} parent=31 // pred_region
          %s296 = smul.u32 2, %s22
          %p297 = scmp.lt.s32.totalorder %s296, 5
          %s298 = scalar_select %p297, %s296, 5
          %s299 = scalar_lea.vmem %s6, %s298
          %s300 = smul.u32 2, %s22
        $region44: #{deeprbp_forward.1} parent=31 // pred_fallthru
          _
        // Predicated region
        $region45: #{deeprbp_forward.1} parent=31 // pred_check
          %p301 = pneg %p210
        $region46: #{deeprbp_forward.1} parent=31 // pred_check_branch
          %303 = sbr.rel (%p301) target = $region48
        $region47: #{deeprbp_forward.1} parent=31 // pred_region
          %s304 = sand.u32 %s200, 1
          %s305 = sand.u32 %s200, 1
          %s306 = smul.addr %s305, 32
          %s307 = scalar_lea.vmem [#allocation3], %s306
          %s308 = smul.u32 2, %s21
          %s309 = smul.u32 2, %s22
          %s310 = smul.addr %s308, 6
          %s311 = sadd.s32 %s309, %s310
          %s312 = smul.addr %s311, 8
          %s313 = scalar_lea.vmem %s7, %s312
          // Predicated region
          $region49: #{deeprbp_forward.1} parent=47 // pred_check
            _
          $region50: #{deeprbp_forward.1} parent=47 // pred_check_branch
            %315 = sbr.rel (0) target = $region52
          $region51: #{deeprbp_forward.1} parent=47 // pred_region
            // Predicated region
            $region53: #{deeprbp_forward.1} parent=51 // pred_check
              _
            $region54: #{deeprbp_forward.1} parent=51 // pred_check_branch
              %317 = sbr.rel (0) target = $region56
            $region55: #{deeprbp_forward.1} parent=51 // pred_region
              loop: start=0, step=1, limit=1
              $region57: #{deeprbp_forward.1} parent=55 // loop_pre_header
                _
              $region58: #{deeprbp_forward.1} parent=55 // loop_header
                %s319 = sphi 0, %s323
                %p320 = scmp.ge.s32.totalorder %s319, 1
                %s324 = sphi %s313, %s313
                %s325 = sphi %s307, %s307
              $region59: #{deeprbp_forward.1} parent=55 // loop_header_branch
                %322 = sbr.rel (%p320) target = $region63
              $region60: #{deeprbp_forward.1} parent=55 // loop_body
                %v326 = vld [vmem:[%s324] sm:$0xff]
                %327 = vst [vmem:[%s325] sm:$0xff] %v326
                %v328 = vld [vmem:[%s324 + $0x8] sm:$0xff]
                %329 = vst [vmem:[%s325 + $0x8] sm:$0xff] %v328
                %v330 = vld [vmem:[%s324 + $0x30] sm:$0xff]
                %331 = vst [vmem:[%s325 + $0x10] sm:$0xff] %v330
                %v332 = vld [vmem:[%s324 + $0x38] sm:$0xff]
                %333 = vst [vmem:[%s325 + $0x18] sm:$0xff] %v332
              $region61: #{deeprbp_forward.1} parent=55 // loop_footer
                %s323 = sadd.s32 1, %s319
              $region62: #{deeprbp_forward.1} parent=55 // loop_footer_branch
                %318 = sbr.rel target = $region58
              $region63: #{deeprbp_forward.1} parent=55 // loop_exit
                _
            $region56: #{deeprbp_forward.1} parent=51 // pred_fallthru
              _
            // Predicated region
            $region64: #{deeprbp_forward.1} parent=51 // pred_check
              _
            $region65: #{deeprbp_forward.1} parent=51 // pred_check_branch
              %335 = sbr.rel target = $region67
            $region66: #{deeprbp_forward.1} parent=51 // pred_region
              _
            $region67: #{deeprbp_forward.1} parent=51 // pred_fallthru
              _
          $region52: #{deeprbp_forward.1} parent=47 // pred_fallthru
            _
          %336 = vnop
        $region48: #{deeprbp_forward.1} parent=31 // pred_fallthru
          _
      $region32: #{deeprbp_forward.1} parent=5 // pred_fallthru
        _
      %p337 = scmp.le.s32.totalorder 1, %s14
      %p338 = scmp.lt.s32.totalorder %s14, 10
      %p339 = pnand %p337, %p338
      %p340 = pneg %p339
      // Predicated region
      $region68: #{deeprbp_forward.1} parent=5 // pred_check
        _
      $region69: #{deeprbp_forward.1} parent=5 // pred_check_branch
        %342 = sbr.rel (%p339) target = $region71
      $region70: #{deeprbp_forward.1} parent=5 // pred_region
        %s343 = ssub.s32 %s14, 1
        %s344 = sand.u32 %s203, 1
        %s345 = sand.u32 %s203, 1
        %s346 = smul.addr %s345, 32
        %s347 = scalar_lea.vmem [#allocation3], %s346
        // Predicated region
        $region72: #{deeprbp_forward.1} parent=70 // pred_check
          %p348 = pneg %p216
        $region73: #{deeprbp_forward.1} parent=70 // pred_check_branch
          %350 = sbr.rel (%p348) target = $region75
        $region74: #{deeprbp_forward.1} parent=70 // pred_region
          _
        $region75: #{deeprbp_forward.1} parent=70 // pred_fallthru
          _
        %s351 = smul.u32 2, %s23
        %p352 = scmp.lt.s32.totalorder %s351, 5
        %s353 = scalar_select %p352, %s351, 5
        %s354 = smul.addr %s353, 2
        %s355 = smul.addr %s354, 8
        %s356 = scalar_lea.vmem %s0, %s355
        %p357 = pneg %p52
        %p358 = pneg %p49
        %p359 = pneg %p73
        %p360 = pneg %p70
        %p361 = pneg %p94
        %p362 = pneg %p91
        %p363 = pneg %p115
        %p364 = pneg %p112
        %p365 = pneg %p136
        %p366 = pneg %p133
        %p367 = scmp.lt.s32.totalorder %s24, 2
        %s368 = scalar_select %p367, %s24, 2
        %s369 = smul.addr %s368, 32
        %s370 = smul.addr %s369, 4
        %s371 = scalar_lea.vmem %s5, %s370
        %p372 = pneg %p162
        %p373 = pneg %p159
        %s374 = smul.u32 2, %s24
        %p375 = scmp.lt.s32.totalorder %s374, 5
        %s376 = scalar_select %p375, %s374, 5
        %s377 = scalar_lea.vmem %s6, %s376
        %p378 = pneg %p188
        %p379 = pneg %p185
        %s380 = sand.u32 %s203, 1
        %s381 = sand.u32 %s203, 1
        %s382 = smul.addr %s381, 32
        %s383 = scalar_lea.vmem [#allocation3], %s382
        %p384 = pneg %p216
        %p385 = pneg %p213
        %p386 = pneg %p244
        %p387 = pneg %p241
        %s388 = sand.u32 %s231, 1
        %s389 = sand.u32 %s231, 1
        %s390 = smul.addr %s389, 32
        %s391 = scalar_lea.vmem [#allocation4], %s390
        %s392 = smul.u32 2, %s23
        %p393 = scmp.lt.s32.totalorder %s392, 5
        %s394 = scalar_select %p393, %s392, 5
        %s395 = smul.addr %s394, 2
        %s396 = smul.addr %s395, 8
        %s397 = scalar_lea.vmem %s0, %s396
        %s398 = smul.u32 2, %s23
        %p399 = scmp.lt.s32.totalorder %s24, 2
        %s400 = scalar_select %p399, %s24, 2
        %s401 = smul.addr %s400, 32
        %s402 = smul.addr %s401, 4
        %s403 = scalar_lea.vmem %s5, %s402
        %s404 = smul.u32 2, %s24
        %p405 = scmp.lt.s32.totalorder %s404, 5
        %s406 = scalar_select %p405, %s404, 5
        %s407 = scalar_lea.vmem %s6, %s406
        %s408 = smul.u32 2, %s24
        %s409 = smul.u32 2, %s23
        %s410 = smul.u32 2, %s24
        %s411 = smul.u32 2, %s23
        %s412 = smul.u32 2, %s24
        %p414 = scmp.eq.s32.totalorder %s24, 0
        // Predicated region
        $region76: #{deeprbp_forward.1} parent=70 // pred_check
          %p415 = pneg %p414
        $region77: #{deeprbp_forward.1} parent=70 // pred_check_branch
          %417 = sbr.rel (%p415) target = $region79
        $region78: #{deeprbp_forward.1} parent=70 // pred_region
          %v418 = vld [vmem:[%s397] sm:$0xff]
          %v419 = vld [vmem:[%s397 + $0x8] sm:$0xff]
          %v420 = vld [vmem:[%s397 + $0x10] sm:$0xff]
          %v421 = vld [vmem:[%s397 + $0x18] sm:$0xff]
          %v422 = vpack.c.bf16 %v420, %v418
          %v423 = vpack.c.bf16 %v421, %v419
          %v424 = vld [vmem:[%s1] sm:$0xf]
          %v425 = vld [vmem:[%s1 + $0x4] sm:$0xf]
          %v426 = vld [vmem:[%s1 + $0x8] sm:$0xf]
          %v427 = vld [vmem:[%s1 + $0xc] sm:$0xf]
          %v428 = vld [vmem:[%s1 + $0x10] sm:$0xf]
          %v429 = vld [vmem:[%s1 + $0x14] sm:$0xf]
          %v430 = vld [vmem:[%s1 + $0x18] sm:$0xf]
          %v431 = vld [vmem:[%s1 + $0x1c] sm:$0xf]
          %v432 = vld [vmem:[%s1 + $0x20] sm:$0xf]
          %v433 = vld [vmem:[%s1 + $0x24] sm:$0xf]
          %v434 = vld [vmem:[%s1 + $0x28] sm:$0xf]
          %v435 = vld [vmem:[%s1 + $0x2c] sm:$0xf]
          %v436 = vld [vmem:[%s1 + $0x30] sm:$0xf]
          %v437 = vld [vmem:[%s1 + $0x34] sm:$0xf]
          %v438 = vld [vmem:[%s1 + $0x38] sm:$0xf]
          %v439 = vld [vmem:[%s1 + $0x3c] sm:$0xf]
          %v440 = vld [vmem:[%s1 + $0x40] sm:$0xf]
          %v441 = vld [vmem:[%s1 + $0x44] sm:$0xf]
          %v442 = vld [vmem:[%s1 + $0x48] sm:$0xf]
          %v443 = vld [vmem:[%s1 + $0x4c] sm:$0xf]
          %v444 = vld [vmem:[%s1 + $0x50] sm:$0xf]
          %v445 = vld [vmem:[%s1 + $0x54] sm:$0xf]
          %v446 = vld [vmem:[%s1 + $0x58] sm:$0xf]
          %v447 = vld [vmem:[%s1 + $0x5c] sm:$0xf]
          %v448 = vld [vmem:[%s1 + $0x60] sm:$0xf]
          %v449 = vld [vmem:[%s1 + $0x64] sm:$0xf]
          %v450 = vld [vmem:[%s1 + $0x68] sm:$0xf]
          %v451 = vld [vmem:[%s1 + $0x6c] sm:$0xf]
          %v452 = vld [vmem:[%s1 + $0x70] sm:$0xf]
          %v453 = vld [vmem:[%s1 + $0x74] sm:$0xf]
          %v454 = vld [vmem:[%s1 + $0x78] sm:$0xf]
          %v455 = vld [vmem:[%s1 + $0x7c] sm:$0xf]
          %v456 = vld [vmem:[%s2] sm:$0x1]
          %v458 = vlaneseq
          %v459 = vshrl.u32 %v458, 7
          %v460 = vsub.s32 0, %v459
          %v461 = vrot.slane %v456, %v460
          %v495 = vunpack.c.l.b16 %v424
          %v496 = vunpack.c.l.b16 %v425
          %v497 = vunpack.c.l.b16 %v426
          %v498 = vunpack.c.l.b16 %v427
          %v499 = vunpack.c.l.b16 %v428
          %v500 = vunpack.c.l.b16 %v429
          %v501 = vunpack.c.l.b16 %v430
          %v502 = vunpack.c.l.b16 %v431
          %v503 = vunpack.c.l.b16 %v432
          %v504 = vunpack.c.l.b16 %v433
          %v505 = vunpack.c.l.b16 %v434
          %v506 = vunpack.c.l.b16 %v435
          %v507 = vunpack.c.l.b16 %v436
          %v508 = vunpack.c.l.b16 %v437
          %v509 = vunpack.c.l.b16 %v438
          %v510 = vunpack.c.l.b16 %v439
          %v511 = vunpack.c.l.b16 %v440
          %v512 = vunpack.c.l.b16 %v441
          %v513 = vunpack.c.l.b16 %v442
          %v514 = vunpack.c.l.b16 %v443
          %v515 = vunpack.c.l.b16 %v444
          %v516 = vunpack.c.l.b16 %v445
          %v517 = vunpack.c.l.b16 %v446
          %v518 = vunpack.c.l.b16 %v447
          %v519 = vunpack.c.l.b16 %v448
          %v520 = vunpack.c.l.b16 %v449
          %v521 = vunpack.c.l.b16 %v450
          %v522 = vunpack.c.l.b16 %v451
          %v523 = vunpack.c.l.b16 %v452
          %v524 = vunpack.c.l.b16 %v453
          %v525 = vunpack.c.l.b16 %v454
          %v526 = vunpack.c.l.b16 %v455
          %v527 = vpack.c.b16 %v496, %v495
          %v528 = vpack.c.b16 %v498, %v497
          %v529 = vpack.c.b16 %v500, %v499
          %v530 = vpack.c.b16 %v502, %v501
          %v531 = vpack.c.b16 %v504, %v503
          %v532 = vpack.c.b16 %v506, %v505
          %v533 = vpack.c.b16 %v508, %v507
          %v534 = vpack.c.b16 %v510, %v509
          %v535 = vpack.c.b16 %v512, %v511
          %v536 = vpack.c.b16 %v514, %v513
          %v537 = vpack.c.b16 %v516, %v515
          %v538 = vpack.c.b16 %v518, %v517
          %v539 = vpack.c.b16 %v520, %v519
          %v540 = vpack.c.b16 %v522, %v521
          %v541 = vpack.c.b16 %v524, %v523
          %v542 = vpack.c.b16 %v526, %v525
          %559 = vmatprep.subr.bf16.mxu0 0
          %560 = vmatpush1.bf16.msra.mxu0 %v527
          %561 = vmatprep.subr.bf16.mxu0 0
          %562 = vmatpush1.bf16.msra.mxu0 %v528
          %563 = vmatprep.subr.bf16.mxu0 0
          %564 = vmatpush1.bf16.msra.mxu0 %v529
          %565 = vmatprep.subr.bf16.mxu0 0
          %566 = vmatpush1.bf16.msra.mxu0 %v530
          %567 = vmatprep.subr.bf16.mxu0 0
          %568 = vmatpush1.bf16.msra.mxu0 %v531
          %569 = vmatprep.subr.bf16.mxu0 0
          %570 = vmatpush1.bf16.msra.mxu0 %v532
          %571 = vmatprep.subr.bf16.mxu0 0
          %572 = vmatpush1.bf16.msra.mxu0 %v533
          %573 = vmatprep.subr.bf16.mxu0 0
          %574 = vmatpush1.bf16.msra.mxu0 %v534
          %575 = vmatprep.subr.bf16.mxu0 0
          %576 = vmatpush1.bf16.msra.mxu0 %v535
          %577 = vmatprep.subr.bf16.mxu0 0
          %578 = vmatpush1.bf16.msra.mxu0 %v536
          %579 = vmatprep.subr.bf16.mxu0 0
          %580 = vmatpush1.bf16.msra.mxu0 %v537
          %581 = vmatprep.subr.bf16.mxu0 0
          %582 = vmatpush1.bf16.msra.mxu0 %v538
          %583 = vmatprep.subr.bf16.mxu0 0
          %584 = vmatpush1.bf16.msra.mxu0 %v539
          %585 = vmatprep.subr.bf16.mxu0 0
          %586 = vmatpush1.bf16.msra.mxu0 %v540
          %587 = vmatprep.subr.bf16.mxu0 0
          %588 = vmatpush1.bf16.msra.mxu0 %v541
          %589 = vmatprep.subr.bf16.mxu0 0
          %590 = vmatpush1.bf16.msra.mxu0 %v542
          %591 = vmatprep.mubr.bf16.mxu0 %v423
          %592 = vmatmul.mubr.bf16.gmra.mrb[0].mxu0 %v422
          %v593 = vpop.f32.mrb[0].mxu0
          %v594 = vadd.f32 %v461, %v593
          %v595 = vpop.f32.mrb[0].mxu0
          %v596 = vpop.f32.mrb[0].mxu0
          %v597 = vadd.f32 %v461, %v596
          %v598 = vpop.f32.mrb[0].mxu0
          %599 = vdwg.mxu0
          %v600 = vmax.f32 %v594, 0.0
          %v601 = vmax.f32 %v597, 0.0
          %v602 = vpack.c.bf16 %v601, %v600
          %v603 = vld [vmem:[%s3] sm:$0xf]
          %v604 = vld [vmem:[%s3 + $0x4] sm:$0xf]
          %v605 = vld [vmem:[%s3 + $0x8] sm:$0xf]
          %v606 = vld [vmem:[%s3 + $0xc] sm:$0xf]
          %v607 = vld [vmem:[%s3 + $0x10] sm:$0xf]
          %v608 = vld [vmem:[%s3 + $0x14] sm:$0xf]
          %v609 = vld [vmem:[%s3 + $0x18] sm:$0xf]
          %v610 = vld [vmem:[%s3 + $0x1c] sm:$0xf]
          %v611 = vld [vmem:[%s3 + $0x20] sm:$0xf]
          %v612 = vld [vmem:[%s3 + $0x24] sm:$0xf]
          %v613 = vld [vmem:[%s3 + $0x28] sm:$0xf]
          %v614 = vld [vmem:[%s3 + $0x2c] sm:$0xf]
          %v615 = vld [vmem:[%s3 + $0x30] sm:$0xf]
          %v616 = vld [vmem:[%s3 + $0x34] sm:$0xf]
          %v617 = vld [vmem:[%s3 + $0x38] sm:$0xf]
          %v618 = vld [vmem:[%s3 + $0x3c] sm:$0xf]
          %v619 = vld [vmem:[%s4] sm:$0x1]
          %v621 = vlaneseq
          %v622 = vshrl.u32 %v621, 7
          %v623 = vsub.s32 0, %v622
          %v624 = vrot.slane %v619, %v623
          %v642 = vunpack.c.l.b16 %v603
          %v643 = vunpack.c.l.b16 %v604
          %v644 = vunpack.c.l.b16 %v605
          %v645 = vunpack.c.l.b16 %v606
          %v646 = vunpack.c.l.b16 %v607
          %v647 = vunpack.c.l.b16 %v608
          %v648 = vunpack.c.l.b16 %v609
          %v649 = vunpack.c.l.b16 %v610
          %v650 = vunpack.c.l.b16 %v611
          %v651 = vunpack.c.l.b16 %v612
          %v652 = vunpack.c.l.b16 %v613
          %v653 = vunpack.c.l.b16 %v614
          %v654 = vunpack.c.l.b16 %v615
          %v655 = vunpack.c.l.b16 %v616
          %v656 = vunpack.c.l.b16 %v617
          %v657 = vunpack.c.l.b16 %v618
          %v658 = vpack.c.b16 %v643, %v642
          %v659 = vpack.c.b16 %v645, %v644
          %v660 = vpack.c.b16 %v647, %v646
          %v661 = vpack.c.b16 %v649, %v648
          %v662 = vpack.c.b16 %v651, %v650
          %v663 = vpack.c.b16 %v653, %v652
          %v664 = vpack.c.b16 %v655, %v654
          %v665 = vpack.c.b16 %v657, %v656
          %674 = vmatprep.subr.bf16.mxu0 0
          %675 = vmatpush1.bf16.msra.mxu0 %v658
          %676 = vmatprep.subr.bf16.mxu0 0
          %677 = vmatpush1.bf16.msra.mxu0 %v659
          %678 = vmatprep.subr.bf16.mxu0 0
          %679 = vmatpush1.bf16.msra.mxu0 %v660
          %680 = vmatprep.subr.bf16.mxu0 0
          %681 = vmatpush1.bf16.msra.mxu0 %v661
          %682 = vmatprep.subr.bf16.mxu0 0
          %683 = vmatpush1.bf16.msra.mxu0 %v662
          %684 = vmatprep.subr.bf16.mxu0 0
          %685 = vmatpush1.bf16.msra.mxu0 %v663
          %686 = vmatprep.subr.bf16.mxu0 0
          %687 = vmatpush1.bf16.msra.mxu0 %v664
          %688 = vmatprep.subr.bf16.mxu0 0
          %689 = vmatpush1.bf16.msra.mxu0 %v665
          %690 = vmatprep.subr.bf16.mxu0 0
          %691 = vmatpush1.bf16.msra.mxu0 0
          %692 = vmatprep.subr.bf16.mxu0 0
          %693 = vmatpush1.bf16.msra.mxu0 0
          %694 = vmatprep.subr.bf16.mxu0 0
          %695 = vmatpush1.bf16.msra.mxu0 0
          %696 = vmatprep.subr.bf16.mxu0 0
          %697 = vmatpush1.bf16.msra.mxu0 0
          %698 = vmatprep.subr.bf16.mxu0 0
          %699 = vmatpush1.bf16.msra.mxu0 0
          %700 = vmatprep.subr.bf16.mxu0 0
          %701 = vmatpush1.bf16.msra.mxu0 0
          %702 = vmatprep.subr.bf16.mxu0 0
          %703 = vmatpush1.bf16.msra.mxu0 0
          %704 = vmatprep.subr.bf16.mxu0 0
          %705 = vmatpush1.bf16.msra.mxu0 0
          %706 = vmatprep.mubr.bf16.mxu0 0
          %707 = vmatmul.mubr.bf16.gmra.mrb[0].mxu0 %v602
          %v708 = vpop.f32.mrb[0].mxu0
          %v709 = vadd.f32 %v624, %v708
          %v710 = vpop.f32.mrb[0].mxu0
          %v711 = vpop.f32.mrb[0].mxu0
          %v712 = vadd.f32 %v624, %v711
          %v713 = vpop.f32.mrb[0].mxu0
          %714 = vdwg.mxu0
          %v715 = vmax.f32 %v709, 0.0
          %v716 = vmax.f32 %v712, 0.0
          %v717 = vpack.c.bf16 %v716, %v715
          %718 = vst [vmem:[#allocation2] sm:$0xff] %v717
        $region79: #{deeprbp_forward.1} parent=70 // pred_fallthru
          _
        %v719 = vld [vmem:[#allocation2] sm:$0xff]
        %v720 = vld [vmem:[%s403] sm:$0xff]
        %v721 = vld [vmem:[%s403 + $0x8] sm:$0xff]
        %v722 = vld [vmem:[%s403 + $0x10] sm:$0xff]
        %v723 = vld [vmem:[%s403 + $0x18] sm:$0xff]
        %v724 = vld [vmem:[%s403 + $0x20] sm:$0xff]
        %v725 = vld [vmem:[%s403 + $0x28] sm:$0xff]
        %v726 = vld [vmem:[%s403 + $0x30] sm:$0xff]
        %v727 = vld [vmem:[%s403 + $0x38] sm:$0xff]
        %v728 = vld [vmem:[%s403 + $0x40] sm:$0xff]
        %v729 = vld [vmem:[%s403 + $0x48] sm:$0xff]
        %v730 = vld [vmem:[%s403 + $0x50] sm:$0xff]
        %v731 = vld [vmem:[%s403 + $0x58] sm:$0xff]
        %v732 = vld [vmem:[%s403 + $0x60] sm:$0xff]
        %v733 = vld [vmem:[%s403 + $0x68] sm:$0xff]
        %v734 = vld [vmem:[%s403 + $0x70] sm:$0xff]
        %v735 = vld [vmem:[%s403 + $0x78] sm:$0xff]
        %v736 = vld [vmem:[%s407] sm:$0x3]
        %v738 = vlaneseq
        %v739 = vshrl.u32 %v738, 7
        %v740 = vsub.s32 0, %v739
        %v741 = vrot.slane %v736, %v740
        %v742 = vlaneseq
        %v743 = vshrl.u32 %v742, 7
        %v744 = vsub.s32 1, %v743
        %v745 = vrot.slane %v736, %v744
        %v764 = vunpack.c.l.b16 %v720
        %v765 = vunpack.c.h.b16 %v720
        %v766 = vunpack.c.l.b16 %v721
        %v767 = vunpack.c.h.b16 %v721
        %v768 = vunpack.c.l.b16 %v722
        %v769 = vunpack.c.h.b16 %v722
        %v770 = vunpack.c.l.b16 %v723
        %v771 = vunpack.c.h.b16 %v723
        %v772 = vunpack.c.l.b16 %v724
        %v773 = vunpack.c.h.b16 %v724
        %v774 = vunpack.c.l.b16 %v725
        %v775 = vunpack.c.h.b16 %v725
        %v776 = vunpack.c.l.b16 %v726
        %v777 = vunpack.c.h.b16 %v726
        %v778 = vunpack.c.l.b16 %v727
        %v779 = vunpack.c.h.b16 %v727
        %v780 = vunpack.c.l.b16 %v728
        %v781 = vunpack.c.h.b16 %v728
        %v782 = vunpack.c.l.b16 %v729
        %v783 = vunpack.c.h.b16 %v729
        %v784 = vunpack.c.l.b16 %v730
        %v785 = vunpack.c.h.b16 %v730
        %v786 = vunpack.c.l.b16 %v731
        %v787 = vunpack.c.h.b16 %v731
        %v788 = vunpack.c.l.b16 %v732
        %v789 = vunpack.c.h.b16 %v732
        %v790 = vunpack.c.l.b16 %v733
        %v791 = vunpack.c.h.b16 %v733
        %v792 = vunpack.c.l.b16 %v734
        %v793 = vunpack.c.h.b16 %v734
        %v794 = vunpack.c.l.b16 %v735
        %v795 = vunpack.c.h.b16 %v735
        %v796 = vpack.c.b16 %v766, %v764
        %v797 = vpack.c.b16 %v767, %v765
        %v798 = vpack.c.b16 %v770, %v768
        %v799 = vpack.c.b16 %v771, %v769
        %v800 = vpack.c.b16 %v774, %v772
        %v801 = vpack.c.b16 %v775, %v773
        %v802 = vpack.c.b16 %v778, %v776
        %v803 = vpack.c.b16 %v779, %v777
        %v804 = vpack.c.b16 %v782, %v780
        %v805 = vpack.c.b16 %v783, %v781
        %v806 = vpack.c.b16 %v786, %v784
        %v807 = vpack.c.b16 %v787, %v785
        %v808 = vpack.c.b16 %v790, %v788
        %v809 = vpack.c.b16 %v791, %v789
        %v810 = vpack.c.b16 %v794, %v792
        %v811 = vpack.c.b16 %v795, %v793
        %828 = vmatprep.subr.bf16.mxu0 %v797
        %829 = vmatpush1.bf16.msra.mxu0 %v796
        %830 = vmatprep.subr.bf16.mxu0 %v799
        %831 = vmatpush1.bf16.msra.mxu0 %v798
        %832 = vmatprep.subr.bf16.mxu0 %v801
        %833 = vmatpush1.bf16.msra.mxu0 %v800
        %834 = vmatprep.subr.bf16.mxu0 %v803
        %835 = vmatpush1.bf16.msra.mxu0 %v802
        %836 = vmatprep.subr.bf16.mxu0 %v805
        %837 = vmatpush1.bf16.msra.mxu0 %v804
        %838 = vmatprep.subr.bf16.mxu0 %v807
        %839 = vmatpush1.bf16.msra.mxu0 %v806
        %840 = vmatprep.subr.bf16.mxu0 %v809
        %841 = vmatpush1.bf16.msra.mxu0 %v808
        %842 = vmatprep.subr.bf16.mxu0 %v811
        %843 = vmatpush1.bf16.msra.mxu0 %v810
        %844 = vmatprep.subr.bf16.mxu0 0
        %845 = vmatpush1.bf16.msra.mxu0 0
        %846 = vmatprep.subr.bf16.mxu0 0
        %847 = vmatpush1.bf16.msra.mxu0 0
        %848 = vmatprep.subr.bf16.mxu0 0
        %849 = vmatpush1.bf16.msra.mxu0 0
        %850 = vmatprep.subr.bf16.mxu0 0
        %851 = vmatpush1.bf16.msra.mxu0 0
        %852 = vmatprep.subr.bf16.mxu0 0
        %853 = vmatpush1.bf16.msra.mxu0 0
        %854 = vmatprep.subr.bf16.mxu0 0
        %855 = vmatpush1.bf16.msra.mxu0 0
        %856 = vmatprep.subr.bf16.mxu0 0
        %857 = vmatpush1.bf16.msra.mxu0 0
        %858 = vmatprep.subr.bf16.mxu0 0
        %859 = vmatpush1.bf16.msra.mxu0 0
        %860 = vmatprep.mubr.bf16.mxu0 0
        %861 = vmatmul.mubr.bf16.gmra.mrb[0].mxu0 %v719
        %v862 = vpop.f32.mrb[0].mxu0
        %v863 = vadd.f32 %v741, %v862
        %v864 = vpop.f32.mrb[0].mxu0
        %v865 = vadd.f32 %v745, %v864
        %v866 = vpop.f32.mrb[0].mxu0
        %v867 = vadd.f32 %v741, %v866
        %v868 = vpop.f32.mrb[0].mxu0
        %v869 = vadd.f32 %v745, %v868
        %870 = vdwg.mxu0
        %v871 = vxor.u32 %v863, 2147483648
        %v872 = vxor.u32 %v865, 2147483648
        %v873 = vxor.u32 %v867, 2147483648
        %v874 = vxor.u32 %v869, 2147483648
        %v875 = vmul.f32 %v871, 1.442695
        %v876 = vpow.pop %v875
        %v877 = vmul.f32 %v872, 1.442695
        %v878 = vpow.pop %v877
        %v879 = vmul.f32 %v873, 1.442695
        %v880 = vpow.pop %v879
        %v881 = vmul.f32 %v874, 1.442695
        %v882 = vpow.pop %v881
        %v883 = vadd.f32 %v876, 1.0
        %v884 = vadd.f32 %v878, 1.0
        %v885 = vadd.f32 %v880, 1.0
        %v886 = vadd.f32 %v882, 1.0
        %v887 = vrcp.pop %v883
        %v888 = vmul.f32 1.0, %v887
        %v889 = vrcp.pop %v884
        %v890 = vmul.f32 1.0, %v889
        %v891 = vrcp.pop %v885
        %v892 = vmul.f32 1.0, %v891
        %v893 = vrcp.pop %v886
        %v894 = vmul.f32 1.0, %v893
        %v895 = vld [vmem:[%s347] sm:$0xff]
        %v896 = vld [vmem:[%s347 + $0x8] sm:$0xff]
        %v897 = vld [vmem:[%s347 + $0x10] sm:$0xff]
        %v898 = vld [vmem:[%s347 + $0x18] sm:$0xff]
        %v899 = vmul.f32 %v888, %v895
        %v900 = vmul.f32 %v890, %v896
        %v901 = vmul.f32 %v892, %v897
        %v902 = vmul.f32 %v894, %v898
        %v903 = vadd.f32 %v899, 1.0
        %v904 = vadd.f32 %v900, 1.0
        %v905 = vadd.f32 %v901, 1.0
        %v906 = vadd.f32 %v902, 1.0
        %v907 = vlog2.pop %v903
        %v908 = vmul.f32 %v907, 0.6931472
        %v909 = vlog2.pop %v904
        %v910 = vmul.f32 %v909, 0.6931472
        %v911 = vlog2.pop %v905
        %v912 = vmul.f32 %v911, 0.6931472
        %v913 = vlog2.pop %v906
        %v914 = vmul.f32 %v913, 0.6931472
        %v915 = vrcp.pop 0.6931472
        %v916 = vmul.f32 %v908, %v915
        %v917 = vmul.f32 %v910, %v915
        %v918 = vmul.f32 %v912, %v915
        %v919 = vmul.f32 %v914, %v915
        %920 = vst [vmem:[%s391] sm:$0xff] %v916
        %921 = vst [vmem:[%s391 + $0x8] sm:$0xff] %v917
        %922 = vst [vmem:[%s391 + $0x10] sm:$0xff] %v918
        %923 = vst [vmem:[%s391 + $0x18] sm:$0xff] %v919
        %s924 = sand.u32 %s231, 1
        %s925 = sand.u32 %s231, 1
        %s926 = smul.addr %s925, 32
        %s927 = scalar_lea.vmem [#allocation4], %s926
        // Predicated region
        $region80: #{deeprbp_forward.1} parent=70 // pred_check
          %p928 = pneg %p241
        $region81: #{deeprbp_forward.1} parent=70 // pred_check_branch
          %930 = sbr.rel (%p928) target = $region83
        $region82: #{deeprbp_forward.1} parent=70 // pred_region
          %s931 = smul.u32 2, %s23
          %s932 = smul.u32 2, %s24
          %s933 = smul.addr %s931, 6
          %s934 = sadd.s32 %s932, %s933
          %s935 = smul.addr %s934, 8
          %s936 = scalar_lea.vmem %s8, %s935
          // Predicated region
          $region84: #{deeprbp_forward.1} parent=82 // pred_check
            _
          $region85: #{deeprbp_forward.1} parent=82 // pred_check_branch
            %938 = sbr.rel (0) target = $region87
          $region86: #{deeprbp_forward.1} parent=82 // pred_region
            // Predicated region
            $region88: #{deeprbp_forward.1} parent=86 // pred_check
              _
            $region89: #{deeprbp_forward.1} parent=86 // pred_check_branch
              %940 = sbr.rel (0) target = $region91
            $region90: #{deeprbp_forward.1} parent=86 // pred_region
              loop: start=0, step=1, limit=1
              $region92: #{deeprbp_forward.1} parent=90 // loop_pre_header
                _
              $region93: #{deeprbp_forward.1} parent=90 // loop_header
                %s942 = sphi 0, %s946
                %p943 = scmp.ge.s32.totalorder %s942, 1
                %s947 = sphi %s927, %s927
                %s948 = sphi %s936, %s936
              $region94: #{deeprbp_forward.1} parent=90 // loop_header_branch
                %945 = sbr.rel (%p943) target = $region98
              $region95: #{deeprbp_forward.1} parent=90 // loop_body
                %v949 = vld [vmem:[%s947] sm:$0xff]
                %950 = vst [vmem:[%s948] sm:$0xff] %v949
                %v951 = vld [vmem:[%s947 + $0x8] sm:$0xff]
                %952 = vst [vmem:[%s948 + $0x8] sm:$0xff] %v951
                %v953 = vld [vmem:[%s947 + $0x10] sm:$0xff]
                %954 = vst [vmem:[%s948 + $0x30] sm:$0xff] %v953
                %v955 = vld [vmem:[%s947 + $0x18] sm:$0xff]
                %956 = vst [vmem:[%s948 + $0x38] sm:$0xff] %v955
              $region96: #{deeprbp_forward.1} parent=90 // loop_footer
                %s946 = sadd.s32 1, %s942
              $region97: #{deeprbp_forward.1} parent=90 // loop_footer_branch
                %941 = sbr.rel target = $region93
              $region98: #{deeprbp_forward.1} parent=90 // loop_exit
                _
            $region91: #{deeprbp_forward.1} parent=86 // pred_fallthru
              _
            // Predicated region
            $region99: #{deeprbp_forward.1} parent=86 // pred_check
              _
            $region100: #{deeprbp_forward.1} parent=86 // pred_check_branch
              %958 = sbr.rel target = $region102
            $region101: #{deeprbp_forward.1} parent=86 // pred_region
              _
            $region102: #{deeprbp_forward.1} parent=86 // pred_fallthru
              _
          $region87: #{deeprbp_forward.1} parent=82 // pred_fallthru
            _
          %959 = vnop
        $region83: #{deeprbp_forward.1} parent=70 // pred_fallthru
          _
      $region71: #{deeprbp_forward.1} parent=5 // pred_fallthru
        _
      %p960 = scmp.le.s32.totalorder 2, %s14
      // Predicated region
      $region103: #{deeprbp_forward.1} parent=5 // pred_check
        %p961 = pneg %p960
      $region104: #{deeprbp_forward.1} parent=5 // pred_check_branch
        %963 = sbr.rel (%p961) target = $region106
      $region105: #{deeprbp_forward.1} parent=5 // pred_region
        %s964 = ssub.s32 %s14, 2
        // Predicated region
        $region107: #{deeprbp_forward.1} parent=105 // pred_check
          %p965 = pneg %p247
        $region108: #{deeprbp_forward.1} parent=105 // pred_check_branch
          %967 = sbr.rel (%p965) target = $region110
        $region109: #{deeprbp_forward.1} parent=105 // pred_region
          %s968 = sand.u32 %s232, 1
          %s969 = sand.u32 %s232, 1
          %s970 = smul.addr %s969, 32
          %s971 = scalar_lea.vmem [#allocation4], %s970
        $region110: #{deeprbp_forward.1} parent=105 // pred_fallthru
          _
      $region106: #{deeprbp_forward.1} parent=5 // pred_fallthru
        _
    $region6: #{deeprbp_forward.1} parent=1 // loop_footer
      %s18 = sadd.s32 1, %s14
    $region7: #{deeprbp_forward.1} parent=1 // loop_footer_branch
      %13 = sbr.rel target = $region3
    $region8: #{deeprbp_forward.1} parent=1 // loop_exit
      _

</llo_original>
